<compile_context>
chip_gen: v5e
topology: v5e:2x2
jax: 0.10.0
libtpu: 0.0.40
codegen_flags: <defaults>
</compile_context>

<pallas_src>
import functools

import jax
import jax.numpy as jnp
from jax.experimental import pallas as pl
from jax.experimental.pallas import tpu as pltpu

EPS = 1e-5


def _seg_stats_kernel(logits_ref, targets_ref, stats_ref,
                      acc_seg, acc_inter, acc_t, acc_pred):
    """Per grid point: one batch element, one H-parallel split, one H-tile.

    logits_ref : [1, C, TH, W]
    targets_ref: [1, TH, W]
    stats_ref  : [1, 1, 4, C]  (rows: seg_loss_sum, inter, target_sum, pred_sum)
    acc_*      : VMEM scratch, lane-dense partial sums (reduced over TH only),
                 persist across the H-tile ("arbitrary") axis.
    """
    hs = pl.program_id(2)

    @pl.when(hs == 0)
    def _():
        acc_seg[...] = jnp.zeros_like(acc_seg)
        acc_inter[...] = jnp.zeros_like(acc_inter)
        acc_t[...] = jnp.zeros_like(acc_t)
        acc_pred[...] = jnp.zeros_like(acc_pred)

    x = logits_ref[0].astype(jnp.float32)          # [C, TH, W]
    t = targets_ref[...].astype(jnp.float32)       # [1, TH, W] -> bcast over C

    # BCE in logits space: softplus(x) - t*x  (stable, no sigmoid / double log).
    sp = jnp.maximum(x, 0.0) + jnp.log(1.0 + jnp.exp(-jnp.abs(x)))
    seg = sp - t * x                               # [C, TH, W]

    pred = x > 0.0                                 # sigmoid(x) > 0.5
    inter_e = jnp.where(pred, t, 0.0)              # [C, TH, W]
    pred_f = jnp.where(pred, 1.0, 0.0)             # [C, TH, W]

    # Reduce only over TH per tile (cheap); lane reduction deferred to the end.
    acc_seg[...] += jnp.sum(seg, axis=1)           # [C, W]
    acc_inter[...] += jnp.sum(inter_e, axis=1)     # [C, W]
    acc_pred[...] += jnp.sum(pred_f, axis=1)       # [C, W]
    acc_t[...] += jnp.sum(t, axis=1)               # [1, W]  (once, not per C)

    @pl.when(hs == pl.num_programs(2) - 1)
    def _():
        seg_sum = jnp.sum(acc_seg[...], axis=1)[None, :]       # [1, C]
        inter_s = jnp.sum(acc_inter[...], axis=1)[None, :]     # [1, C]
        pred_s = jnp.sum(acc_pred[...], axis=1)[None, :]       # [1, C]
        t_sum = jnp.broadcast_to(
            jnp.sum(acc_t[...], axis=1, keepdims=True), seg_sum.shape)  # [1, C]
        stats_ref[0, 0] = jnp.concatenate(
            [seg_sum, inter_s, t_sum, pred_s], axis=0)          # [4, C]


def _sublane_mult(dtype):
    itemsize = jnp.dtype(dtype).itemsize
    return 8 * max(1, 4 // max(1, itemsize))   # f32->8, bf16->16, int8/bool->32


def _choose_tiling(H, h_splits, C, W, logits_dtype, targets_dtype, budget_bytes):
    """Pick (h_splits, tile_h): largest sublane-aligned divisor within budget."""
    align = max(_sublane_mult(logits_dtype), _sublane_mult(targets_dtype))
    l_item = jnp.dtype(logits_dtype).itemsize
    t_item = jnp.dtype(targets_dtype).itemsize
    # per-row footprint: double-buffered logits/targets blocks + a few f32 temps
    row_bytes = C * W * (2 * l_item + 3 * 4) + W * (2 * t_item + 4)
    cap = max(align, budget_bytes // max(1, row_bytes))

    if h_splits < 1 or H % h_splits != 0 or (
            h_splits > 1 and (H // h_splits) % align != 0):
        h_splits = 1
    chunk = H // h_splits
    cands = [d for d in range(align, min(chunk, cap) + 1, align) if chunk % d == 0]
    if cands:
        tile_h = max(cands)
    else:
        # No aligned divisor (e.g. odd / tiny H): one full-H block is still legal.
        # TODO(synk): pad H up to the sublane multiple instead of one big block.
        h_splits, tile_h = 1, H
    return h_splits, tile_h


def _compute_seg_stats(mask_logits, targets, *, h_splits=None,
                       vmem_budget_bytes=12 << 20):
    B, C, H, W = mask_logits.shape
    assert targets.shape == (B, H, W)

    if h_splits is None:
        # On v7x (2 TCs/chip) a batch-only parallel axis of size 1 idles a core.
        h_splits = 2 if B == 1 else 1
    h_splits, tile_h = _choose_tiling(
        H, h_splits, C, W, mask_logits.dtype, targets.dtype, vmem_budget_bytes)
    chunk = H // h_splits
    n_hs = max(1, chunk // tile_h)

    def logits_map(b, hp, hs):
        return (b, 0, hp * n_hs + hs, 0)

    def targets_map(b, hp, hs):
        return (b, hp * n_hs + hs, 0)

    def out_map(b, hp, hs):
        return (b, hp, 0, 0)

    grid_spec = pltpu.PrefetchScalarGridSpec(
        num_scalar_prefetch=0,
        grid=(B, h_splits, n_hs),
        in_specs=[
            pl.BlockSpec((1, C, tile_h, W), logits_map),
            pl.BlockSpec((1, tile_h, W), targets_map),
        ],
        out_specs=pl.BlockSpec((1, 1, 4, C), out_map),
        scratch_shapes=[
            pltpu.VMEM((C, W), jnp.float32),   # seg partial sums
            pltpu.VMEM((C, W), jnp.float32),   # intersection partial sums
            pltpu.VMEM((1, W), jnp.float32),   # target partial sums (shared over C)
            pltpu.VMEM((C, W), jnp.float32),   # predicted-mask partial sums
        ],
    )

    bytes_accessed = (mask_logits.size * mask_logits.dtype.itemsize
                      + targets.size * targets.dtype.itemsize
                      + B * h_splits * 4 * C * 4)
    cost = pl.CostEstimate(
        flops=10 * B * C * H * W,
        transcendentals=2 * B * C * H * W,
        bytes_accessed=int(bytes_accessed),
    )

    stats = pl.pallas_call(
        _seg_stats_kernel,
        out_shape=jax.ShapeDtypeStruct((B, h_splits, 4, C), jnp.float32),
        grid_spec=grid_spec,
        compiler_params=pltpu.CompilerParams(
            dimension_semantics=("parallel", "parallel", "arbitrary")),
        cost_estimate=cost,
    )(mask_logits, targets)

    return jnp.sum(stats, axis=1)   # combine parallel H-splits -> [B, 4, C]


@functools.partial(jax.jit, static_argnames=("multimask", "h_splits"))
def custom_seg_loss(mask_logits, targets, iou_predictions, *,
                    multimask=True, h_splits=None):
    """JAX/Pallas equivalent of CustomSegLoss.forward."""
    if not multimask:
        mask_logits = mask_logits[:, :1, :, :]

    B, C, H, W = mask_logits.shape
    # Inputs stream at their native dtype (bf16/f32/...); upcast happens in-kernel.
    stats = _compute_seg_stats(mask_logits, targets, h_splits=h_splits)  # [B,4,C]

    hw = float(H * W)
    seg_loss = stats[:, 0, :] / hw                   # [B, C] mean BCE per mask
    inter = stats[:, 1, :]                           # [B, C]
    union = stats[:, 2, :] + stats[:, 3, :] - inter  # [B, C]
    ious = inter / (union + EPS)                     # [B, C]

    best_loss_inds = jnp.argmin(seg_loss, axis=1)    # [B]
    batch_inds = jnp.arange(B)
    selected_seg_loss = jnp.mean(seg_loss[batch_inds, best_loss_inds])
    selected_iou = jnp.mean(ious[batch_inds, best_loss_inds])

    score_loss = jnp.mean(jnp.abs(iou_predictions.astype(jnp.float32) - ious))
    total_loss = selected_seg_loss + score_loss * 0.25

    loss_dict = {
        "total_loss": total_loss,
        "seg_loss": selected_seg_loss,
        "focal_loss": selected_seg_loss,
        "dice_loss": selected_seg_loss,
        "iou_loss": score_loss * 0.25,
        "real_iou": selected_iou,
        "real_backward_mask_logits_index": best_loss_inds,
    }
    return total_loss, loss_dict


def _reference_stable(mask_logits, targets, iou_predictions):
    """Pure-JAX reference using the same logits-space BCE math as the kernel."""
    B, C, H, W = mask_logits.shape
    x = mask_logits.astype(jnp.float32)
    t = jnp.broadcast_to(targets[:, None].astype(jnp.float32), x.shape)
    sp = jnp.maximum(x, 0.0) + jnp.log(1.0 + jnp.exp(-jnp.abs(x)))
    seg = (sp - t * x).mean(axis=(2, 3))
    pb = (x > 0.0).astype(jnp.float32)
    inter = (t * pb).sum(axis=(2, 3))
    union = t.sum(axis=(2, 3)) + pb.sum(axis=(2, 3)) - inter
    ious = inter / (union + EPS)
    best = jnp.argmin(seg, axis=1)
    bi = jnp.arange(B)
    sel = seg[bi, best].mean()
    score = jnp.abs(iou_predictions.astype(jnp.float32) - ious).mean()
    return sel + 0.25 * score


def _reference_torch_eps(mask_logits, targets, iou_predictions):
    """Pure-JAX reference mirroring the exact PyTorch formula (eps inside log)."""
    B, C, H, W = mask_logits.shape
    x = mask_logits.astype(jnp.float32)
    t = jnp.broadcast_to(targets[:, None].astype(jnp.float32), x.shape)
    p = jax.nn.sigmoid(x)
    seg = (-t * jnp.log(p + EPS) - (1 - t) * jnp.log(1 - p + EPS)).mean(axis=(2, 3))
    pb = (p > 0.5).astype(jnp.float32)
    inter = (t * pb).sum(axis=(2, 3))
    union = t.sum(axis=(2, 3)) + pb.sum(axis=(2, 3)) - inter
    ious = inter / (union + EPS)
    best = jnp.argmin(seg, axis=1)
    bi = jnp.arange(B)
    sel = seg[bi, best].mean()
    score = jnp.abs(iou_predictions.astype(jnp.float32) - ious).mean()
    return sel + 0.25 * score


if __name__ == "__main__":
    B, C, H, W = 2, 4, 32, 32

    key = jax.random.PRNGKey(0)
    k1, k2, k3 = jax.random.split(key, 3)
    # bf16 logits: exercises the bandwidth-friendly path (kernel upcasts internally).
    mask_logits = (jax.random.normal(k1, (B, C, H, W), jnp.float32) * 2.0
                   ).astype(jnp.bfloat16)
    targets = jax.random.bernoulli(k2, 0.4, (B, H, W)).astype(jnp.float32)
    iou_predictions = jax.random.uniform(k3, (B, C), dtype=jnp.float32)

    total_loss, loss_dict = custom_seg_loss(
        mask_logits, targets, iou_predictions, multimask=True)
    total_loss = jax.block_until_ready(total_loss)
    jax.block_until_ready(loss_dict)

    ref_stable = jax.block_until_ready(
        _reference_stable(mask_logits, targets, iou_predictions))
    ref_torch = jax.block_until_ready(
        _reference_torch_eps(mask_logits, targets, iou_predictions))

    # exact match vs. the same stable math
    assert jnp.allclose(total_loss, ref_stable, rtol=1e-5, atol=1e-5), \
        (total_loss, ref_stable)
    # close to the PyTorch eps-in-log formula (differs only at saturated logits)
    assert jnp.allclose(total_loss, ref_torch, rtol=2e-3, atol=2e-3), \
        (total_loss, ref_torch)

    # Also exercise the explicit H-split (v7x dual-TensorCore) path.
    total2, _ = custom_seg_loss(
        mask_logits, targets, iou_predictions, multimask=True, h_splits=2)
    total2 = jax.block_until_ready(total2)
    assert jnp.allclose(total2, ref_stable, rtol=1e-5, atol=1e-5), \
        (total2, ref_stable)

    print("KERNEL_OK")
</pallas_src>

<mosaic_0001>
module attributes {stable_mosaic.version = 11 : i64} {
  func.func @_seg_stats_kernel(%arg0: i32, %arg1: i32, %arg2: i32, %arg3: memref<1x4x32x32xbf16, #tpu.memory_space<vmem>>, %arg4: memref<1x32x32xf32, #tpu.memory_space<vmem>>, %arg5: memref<1x1x4x4xf32, #tpu.memory_space<vmem>>, %arg6: memref<4x32xf32, #tpu.memory_space<vmem>>, %arg7: memref<4x32xf32, #tpu.memory_space<vmem>>, %arg8: memref<1x32xf32, #tpu.memory_space<vmem>>, %arg9: memref<4x32xf32, #tpu.memory_space<vmem>>) attributes {dimension_semantics = [#tpu.dimension_semantics<parallel>, #tpu.dimension_semantics<parallel>, #tpu.dimension_semantics<arbitrary>], iteration_bounds = array<i64: 2, 1, 1>, scalar_prefetch = 0 : i64, scratch_operands = 4 : i64, tpu.core_type = #tpu.core_type<tc>, window_params = [{transform_indices = @transform_0, window_bounds = array<i64: 1, 4, 32, 32>}, {transform_indices = @transform_1, window_bounds = array<i64: 1, 32, 32>}, {transform_indices = @transform_2, window_bounds = array<i64: 1, 1, 4, 4>}]} {
    %c0_i32 = arith.constant 0 : i32
    %0 = arith.cmpi eq, %arg2, %c0_i32 : i32
    %1 = arith.extui %0 : i1 to i32
    %c0_i32_0 = arith.constant 0 : i32
    %2 = arith.cmpi ne, %1, %c0_i32_0 : i32
    scf.if %2 {
      %cst_35 = arith.constant 0.000000e+00 : f32
      %48 = vector.broadcast %cst_35 : f32 to vector<4x32xf32>
      %c0_36 = arith.constant 0 : index
      %c0_37 = arith.constant 0 : index
      %49 = vector.load %arg6[%c0_36, %c0_37] : memref<4x32xf32, #tpu.memory_space<vmem>>, vector<4x32xf32>
      tpu.vector_store %arg6[%c0_36, %c0_37], %48 {strides = array<i32>} : memref<4x32xf32, #tpu.memory_space<vmem>>, vector<4x32xf32>,
      %cst_38 = arith.constant 0.000000e+00 : f32
      %50 = vector.broadcast %cst_38 : f32 to vector<4x32xf32>
      %c0_39 = arith.constant 0 : index
      %c0_40 = arith.constant 0 : index
      %51 = vector.load %arg7[%c0_39, %c0_40] : memref<4x32xf32, #tpu.memory_space<vmem>>, vector<4x32xf32>
      tpu.vector_store %arg7[%c0_39, %c0_40], %50 {strides = array<i32>} : memref<4x32xf32, #tpu.memory_space<vmem>>, vector<4x32xf32>,
      %cst_41 = arith.constant 0.000000e+00 : f32
      %52 = vector.broadcast %cst_41 : f32 to vector<1x32xf32>
      %c0_42 = arith.constant 0 : index
      %c0_43 = arith.constant 0 : index
      %53 = vector.load %arg8[%c0_42, %c0_43] : memref<1x32xf32, #tpu.memory_space<vmem>>, vector<1x32xf32>
      tpu.vector_store %arg8[%c0_42, %c0_43], %52 {strides = array<i32>} : memref<1x32xf32, #tpu.memory_space<vmem>>, vector<1x32xf32>,
      %cst_44 = arith.constant 0.000000e+00 : f32
      %54 = vector.broadcast %cst_44 : f32 to vector<4x32xf32>
      %c0_45 = arith.constant 0 : index
      %c0_46 = arith.constant 0 : index
      %55 = vector.load %arg9[%c0_45, %c0_46] : memref<4x32xf32, #tpu.memory_space<vmem>>, vector<4x32xf32>
      tpu.vector_store %arg9[%c0_45, %c0_46], %54 {strides = array<i32>} : memref<4x32xf32, #tpu.memory_space<vmem>>, vector<4x32xf32>,
    } else {
    }
    %c0 = arith.constant 0 : index
    %c0_1 = arith.constant 0 : index
    %c0_2 = arith.constant 0 : index
    %c0_3 = arith.constant 0 : index
    %3 = vector.load %arg3[%c0, %c0_1, %c0_2, %c0_3] : memref<1x4x32x32xbf16, #tpu.memory_space<vmem>>, vector<1x4x32x32xbf16>
    %4 = vector.shape_cast %3 : vector<1x4x32x32xbf16> to vector<4x32x32xbf16>
    %5 = arith.extf %4 : vector<4x32x32xbf16> to vector<4x32x32xf32>
    %c0_4 = arith.constant 0 : index
    %c0_5 = arith.constant 0 : index
    %c0_6 = arith.constant 0 : index
    %6 = vector.load %arg4[%c0_4, %c0_5, %c0_6] : memref<1x32x32xf32, #tpu.memory_space<vmem>>, vector<1x32x32xf32>
    %cst = arith.constant 0.000000e+00 : f32
    %7 = vector.broadcast %cst : f32 to vector<4x32x32xf32>
    %8 = arith.maximumf %5, %7 : vector<4x32x32xf32>
    %9 = math.absf %5 : vector<4x32x32xf32>
    %cst_7 = arith.constant 0.000000e+00 : f32
    %10 = vector.broadcast %cst_7 : f32 to vector<4x32x32xf32>
    %11 = arith.subf %10, %9 : vector<4x32x32xf32>
    %12 = math.exp %11 : vector<4x32x32xf32>
    %cst_8 = arith.constant 1.000000e+00 : f32
    %13 = vector.broadcast %cst_8 : f32 to vector<4x32x32xf32>
    %14 = arith.addf %13, %12 : vector<4x32x32xf32>
    %15 = math.log %14 : vector<4x32x32xf32>
    %16 = arith.addf %8, %15 : vector<4x32x32xf32>
    %17 = vector.broadcast %6 : vector<1x32x32xf32> to vector<4x32x32xf32>
    %18 = arith.mulf %17, %5 : vector<4x32x32xf32>
    %19 = arith.subf %16, %18 : vector<4x32x32xf32>
    %cst_9 = arith.constant 0.000000e+00 : f32
    %20 = vector.broadcast %cst_9 : f32 to vector<4x32x32xf32>
    %21 = arith.cmpf ogt, %5, %20 : vector<4x32x32xf32>
    %cst_10 = arith.constant 0.000000e+00 : f32
    %22 = vector.shape_cast %6 : vector<1x32x32xf32> to vector<1x32x32xf32>
    %23 = vector.broadcast %22 : vector<1x32x32xf32> to vector<4x32x32xf32>
    %24 = vector.broadcast %cst_10 : f32 to vector<4x32x32xf32>
    %25 = arith.select %21, %23, %24 : vector<4x32x32xi1>, vector<4x32x32xf32>
    %cst_11 = arith.constant 1.000000e+00 : f32
    %cst_12 = arith.constant 0.000000e+00 : f32
    %26 = vector.broadcast %cst_11 : f32 to vector<4x32x32xf32>
    %27 = vector.broadcast %cst_12 : f32 to vector<4x32x32xf32>
    %28 = arith.select %21, %26, %27 : vector<4x32x32xi1>, vector<4x32x32xf32>
    %c0_13 = arith.constant 0 : index
    %c0_14 = arith.constant 0 : index
    %29 = vector.load %arg6[%c0_13, %c0_14] : memref<4x32xf32, #tpu.memory_space<vmem>>, vector<4x32xf32>
    %cst_15 = arith.constant dense<0.000000e+00> : vector<4x32xf32>
    %30 = vector.multi_reduction <add>, %19, %cst_15 [1] : vector<4x32x32xf32> to vector<4x32xf32>
    %31 = arith.addf %29, %30 : vector<4x32xf32>
    %c0_16 = arith.constant 0 : index
    %c0_17 = arith.constant 0 : index
    %32 = vector.load %arg6[%c0_16, %c0_17] : memref<4x32xf32, #tpu.memory_space<vmem>>, vector<4x32xf32>
    tpu.vector_store %arg6[%c0_16, %c0_17], %31 {strides = array<i32>} : memref<4x32xf32, #tpu.memory_space<vmem>>, vector<4x32xf32>,
    %c0_18 = arith.constant 0 : index
    %c0_19 = arith.constant 0 : index
    %33 = vector.load %arg7[%c0_18, %c0_19] : memref<4x32xf32, #tpu.memory_space<vmem>>, vector<4x32xf32>
    %cst_20 = arith.constant dense<0.000000e+00> : vector<4x32xf32>
    %34 = vector.multi_reduction <add>, %25, %cst_20 [1] : vector<4x32x32xf32> to vector<4x32xf32>
    %35 = arith.addf %33, %34 : vector<4x32xf32>
    %c0_21 = arith.constant 0 : index
    %c0_22 = arith.constant 0 : index
    %36 = vector.load %arg7[%c0_21, %c0_22] : memref<4x32xf32, #tpu.memory_space<vmem>>, vector<4x32xf32>
    tpu.vector_store %arg7[%c0_21, %c0_22], %35 {strides = array<i32>} : memref<4x32xf32, #tpu.memory_space<vmem>>, vector<4x32xf32>,
    %c0_23 = arith.constant 0 : index
    %c0_24 = arith.constant 0 : index
    %37 = vector.load %arg9[%c0_23, %c0_24] : memref<4x32xf32, #tpu.memory_space<vmem>>, vector<4x32xf32>
    %cst_25 = arith.constant dense<0.000000e+00> : vector<4x32xf32>
    %38 = vector.multi_reduction <add>, %28, %cst_25 [1] : vector<4x32x32xf32> to vector<4x32xf32>
    %39 = arith.addf %37, %38 : vector<4x32xf32>
    %c0_26 = arith.constant 0 : index
    %c0_27 = arith.constant 0 : index
    %40 = vector.load %arg9[%c0_26, %c0_27] : memref<4x32xf32, #tpu.memory_space<vmem>>, vector<4x32xf32>
    tpu.vector_store %arg9[%c0_26, %c0_27], %39 {strides = array<i32>} : memref<4x32xf32, #tpu.memory_space<vmem>>, vector<4x32xf32>,
    %c0_28 = arith.constant 0 : index
    %c0_29 = arith.constant 0 : index
    %41 = vector.load %arg8[%c0_28, %c0_29] : memref<1x32xf32, #tpu.memory_space<vmem>>, vector<1x32xf32>
    %cst_30 = arith.constant dense<0.000000e+00> : vector<1x32xf32>
    %42 = vector.multi_reduction <add>, %6, %cst_30 [1] : vector<1x32x32xf32> to vector<1x32xf32>
    %43 = arith.addf %41, %42 : vector<1x32xf32>
    %c0_31 = arith.constant 0 : index
    %c0_32 = arith.constant 0 : index
    %44 = vector.load %arg8[%c0_31, %c0_32] : memref<1x32xf32, #tpu.memory_space<vmem>>, vector<1x32xf32>
    tpu.vector_store %arg8[%c0_31, %c0_32], %43 {strides = array<i32>} : memref<1x32xf32, #tpu.memory_space<vmem>>, vector<1x32xf32>,
    %c0_i32_33 = arith.constant 0 : i32
    %45 = arith.cmpi eq, %arg2, %c0_i32_33 : i32
    %46 = arith.extui %45 : i1 to i32
    %c0_i32_34 = arith.constant 0 : i32
    %47 = arith.cmpi ne, %46, %c0_i32_34 : i32
    scf.if %47 {
      %c0_35 = arith.constant 0 : index
      %c0_36 = arith.constant 0 : index
      %48 = vector.load %arg6[%c0_35, %c0_36] : memref<4x32xf32, #tpu.memory_space<vmem>>, vector<4x32xf32>
      %cst_37 = arith.constant dense<0.000000e+00> : vector<4xf32>
      %49 = vector.multi_reduction <add>, %48, %cst_37 [1] : vector<4x32xf32> to vector<4xf32>
      %50 = vector.shape_cast %49 : vector<4xf32> to vector<1x4xf32>
      %c0_38 = arith.constant 0 : index
      %c0_39 = arith.constant 0 : index
      %51 = vector.load %arg7[%c0_38, %c0_39] : memref<4x32xf32, #tpu.memory_space<vmem>>, vector<4x32xf32>
      %cst_40 = arith.constant dense<0.000000e+00> : vector<4xf32>
      %52 = vector.multi_reduction <add>, %51, %cst_40 [1] : vector<4x32xf32> to vector<4xf32>
      %53 = vector.shape_cast %52 : vector<4xf32> to vector<1x4xf32>
      %c0_41 = arith.constant 0 : index
      %c0_42 = arith.constant 0 : index
      %54 = vector.load %arg9[%c0_41, %c0_42] : memref<4x32xf32, #tpu.memory_space<vmem>>, vector<4x32xf32>
      %cst_43 = arith.constant dense<0.000000e+00> : vector<4xf32>
      %55 = vector.multi_reduction <add>, %54, %cst_43 [1] : vector<4x32xf32> to vector<4xf32>
      %56 = vector.shape_cast %55 : vector<4xf32> to vector<1x4xf32>
      %c0_44 = arith.constant 0 : index
      %c0_45 = arith.constant 0 : index
      %57 = vector.load %arg8[%c0_44, %c0_45] : memref<1x32xf32, #tpu.memory_space<vmem>>, vector<1x32xf32>
      %cst_46 = arith.constant dense<0.000000e+00> : vector<1xf32>
      %58 = vector.multi_reduction <add>, %57, %cst_46 [1] : vector<1x32xf32> to vector<1xf32>
      %59 = vector.shape_cast %58 : vector<1xf32> to vector<1x1xf32>
      %60 = vector.shape_cast %59 : vector<1x1xf32> to vector<1x1xf32>
      %61 = vector.broadcast %60 : vector<1x1xf32> to vector<1x4xf32>
      %62 = tpu.concatenate %50, %53, %61, %56 in 0 : vector<1x4xf32>, vector<1x4xf32>, vector<1x4xf32>, vector<1x4xf32> -> vector<4x4xf32>
      %c0_47 = arith.constant 0 : index
      %c0_48 = arith.constant 0 : index
      %c0_49 = arith.constant 0 : index
      %c0_50 = arith.constant 0 : index
      %63 = vector.load %arg5[%c0_47, %c0_48, %c0_49, %c0_50] : memref<1x1x4x4xf32, #tpu.memory_space<vmem>>, vector<1x1x4x4xf32>
      %64 = vector.shape_cast %63 : vector<1x1x4x4xf32> to vector<4x4xf32>
      %65 = vector.shape_cast %62 : vector<4x4xf32> to vector<1x1x4x4xf32>
      tpu.vector_store %arg5[%c0_47, %c0_48, %c0_49, %c0_50], %65 {strides = array<i32>} : memref<1x1x4x4xf32, #tpu.memory_space<vmem>>, vector<1x1x4x4xf32>,
    } else {
    }
    return
  }
  func.func @transform_0(%arg0: i32, %arg1: i32, %arg2: i32) -> (i32, i32, i32, i32) {
    %c1_i32 = arith.constant 1 : i32
    %0 = arith.muli %arg1, %c1_i32 : i32
    %1 = arith.addi %0, %arg2 : i32
    %c0_i32 = arith.constant 0 : i32
    %c0_i32_0 = arith.constant 0 : i32
    %c0_i32_1 = arith.constant 0 : i32
    return %arg0, %c0_i32, %1, %c0_i32_0 : i32, i32, i32, i32
  }
  func.func @transform_1(%arg0: i32, %arg1: i32, %arg2: i32) -> (i32, i32, i32) {
    %c1_i32 = arith.constant 1 : i32
    %0 = arith.muli %arg1, %c1_i32 : i32
    %1 = arith.addi %0, %arg2 : i32
    %c0_i32 = arith.constant 0 : i32
    %c0_i32_0 = arith.constant 0 : i32
    return %arg0, %1, %c0_i32 : i32, i32, i32
  }
  func.func @transform_2(%arg0: i32, %arg1: i32, %arg2: i32) -> (i32, i32, i32, i32) {
    %c0_i32 = arith.constant 0 : i32
    %c0_i32_0 = arith.constant 0 : i32
    %c0_i32_1 = arith.constant 0 : i32
    return %arg0, %arg1, %c0_i32, %c0_i32_0 : i32, i32, i32, i32
  }
}

</mosaic_0001>

<llo_original>
// kernel: custom_seg_loss.1
$region0: #{custom_seg_loss.1}
  #allocation0 [shape = 'u32[]', space=smem, size = 0x4, offset = 0x4, fixed_abs, tag = 'smem constant byte address 0x4 - core index']
  #allocation1 [shape = 'u32[72,128]{1,0:T(1,128)}', space=vmem, size = 0x9000, scoped, tag = 'internal scratch']
  #allocation2 [shape = 'f32[4,32]{1,0:T(4,128)}', space=vmem, size = 0x800, scoped, tag = 'scratch operand']
  #allocation3 [shape = 'f32[4,32]{1,0:T(4,128)}', space=vmem, size = 0x800, scoped, tag = 'scratch operand']
  #allocation4 [shape = 'f32[1,32]{1,0:T(1,128)}', space=vmem, size = 0x200, scoped, tag = 'scratch operand']
  #allocation5 [shape = 'f32[4,32]{1,0:T(4,128)}', space=vmem, size = 0x800, scoped, tag = 'scratch operand']
  %s0 = inlined_call_operand.hbm [shape: bf16[2,4,32,32], index: 0, kind: input, shape index: {}]
  %s1 = inlined_call_operand.hbm [shape: f32[2,32,32], index: 1, kind: input, shape index: {}]
  %s2 = inlined_call_operand.vmem [shape: f32[2,1,4,4], index: 2, kind: output, shape index: {}]
  %s3 = sld [smem:[#allocation0]]
  $region57: #{custom_seg_loss.1} parent=0
    _
  %s5 = ssub.s32 1, %s3
  %s6 = scalar_select 0, %s5, %s3
  $region1: #{custom_seg_loss.1} parent=0
    #allocation6 [shape = 'u8[65536]{0}', space=vmem, size = 0x10000, scoped, tag = 'input window, operand 0']
    #allocation7 [shape = 's32[2]{0}', space=sflag, size = 0x8, scoped, tag = 'scoped memory for custom_seg_loss.1']
    #allocation8 [shape = 'u8[32768]{0}', space=vmem, size = 0x8000, scoped, tag = 'input window, operand 1']
    #allocation9 [shape = 's32[2]{0}', space=sflag, size = 0x8, scoped, tag = 'scoped memory for custom_seg_loss.1']
    %7 = vsyncpa [#allocation7], 0
    %s8 = scalar_lea.sflag [#allocation7], 1
    %9 = vsyncpa %s8, 0
    %10 = vsyncpa [#allocation9], 0
    %s11 = scalar_lea.sflag [#allocation9], 1
    %12 = vsyncpa %s11, 0
    loop: start=0, step=1, limit=4
    $region2: #{custom_seg_loss.1} parent=1 // loop_pre_header
      _
    $region3: #{custom_seg_loss.1} parent=1 // loop_header
      %s14 = sphi 0, %s18
      %p15 = scmp.ge.s32.totalorder %s14, 4
      %s21 = sphi 0, %s40
      %s22 = sphi 0, %s36
      %s23 = sphi 0, %s32
      %s24 = sphi 0, %s21
      %s25 = sphi 0, %s22
      %s26 = sphi 0, %s23
      %s27 = sphi 0, %s24
      %s28 = sphi 0, %s25
      %s29 = sphi 0, %s26
      %s47 = sphi 0, %s49
      %s50 = sphi 0, %s47
      %s51 = sphi 0, %s50
      %s67 = sphi 0, %s51
      %s77 = sphi 0, %s79
      %s80 = sphi 0, %s77
      %s81 = sphi 0, %s80
      %s97 = sphi 0, %s81
      %s105 = sphi 0, %s107
      %s108 = sphi 0, %s105
      %s109 = sphi 0, %s108
      %s125 = sphi 0, %s109
    $region4: #{custom_seg_loss.1} parent=1 // loop_header_branch
      %17 = sbr.rel (%p15) target = $region8
    $region5: #{custom_seg_loss.1} parent=1 // loop_body
      %s19 = ssub.s32 %s14, 1
      %s20 = ssub.s32 %s14, 2
      %s30 = sadd.s32 1, %s23
      %p31 = scmp.ge.s32.totalorder %s30, 1
      %s32 = scalar_select %p31, 0, %s30
      %s33 = sadd.s32 1, %s22
      %s34 = scalar_select %p31, %s33, %s22
      %p35 = scmp.ge.s32.totalorder %s34, 1
      %s36 = scalar_select %p35, 0, %s34
      %s37 = sadd.s32 1, %s21
      %s38 = scalar_select %p35, %s37, %s21
      %p39 = scmp.ge.s32.totalorder %s38, 2
      %s40 = scalar_select %p39, 0, %s38
      %s41 = sadd.s32 %s22, %s23
      %s42 = sadd.s32 %s36, %s32
      %s43 = ssub.s32 %s21, %s40
      %s44 = ssub.s32 %s41, %s42
      %s45 = sor.u32 %s43, %s44
      %p46 = scmp.eq.s32.totalorder %s45, 0
      %s48 = sadd.s32 %s47, 1
      %s49 = scalar_select %p46, %s47, %s48
      %p52 = pneg %p46
      %p53 = scmp.eq.s32.totalorder %s14, 1
      %p54 = por %p52, %p53
      %p55 = scmp.ne.s32.totalorder %s47, %s50
      %p56 = scmp.eq.s32.totalorder %s14, 0
      %p57 = por %p55, %p56
      %p58 = scmp.ne.s32.totalorder %s47, %s50
      %p59 = scmp.eq.s32.totalorder %s19, 1
      %p60 = por %p58, %p59
      %p61 = scmp.ne.s32.totalorder %s50, %s51
      %p62 = scmp.eq.s32.totalorder %s19, 0
      %p63 = por %p61, %p62
      %p64 = scmp.ne.s32.totalorder %s50, %s51
      %p65 = scmp.eq.s32.totalorder %s20, 1
      %p66 = por %p64, %p65
      %p68 = scmp.ne.s32.totalorder %s51, %s67
      %p69 = scmp.eq.s32.totalorder %s20, 0
      %p70 = por %p68, %p69
      %s71 = sadd.s32 %s22, %s23
      %s72 = sadd.s32 %s36, %s32
      %s73 = ssub.s32 %s21, %s40
      %s74 = ssub.s32 %s71, %s72
      %s75 = sor.u32 %s73, %s74
      %p76 = scmp.eq.s32.totalorder %s75, 0
      %s78 = sadd.s32 %s77, 1
      %s79 = scalar_select %p76, %s77, %s78
      %p82 = pneg %p76
      %p83 = scmp.eq.s32.totalorder %s14, 1
      %p84 = por %p82, %p83
      %p85 = scmp.ne.s32.totalorder %s77, %s80
      %p86 = scmp.eq.s32.totalorder %s14, 0
      %p87 = por %p85, %p86
      %p88 = scmp.ne.s32.totalorder %s77, %s80
      %p89 = scmp.eq.s32.totalorder %s19, 1
      %p90 = por %p88, %p89
      %p91 = scmp.ne.s32.totalorder %s80, %s81
      %p92 = scmp.eq.s32.totalorder %s19, 0
      %p93 = por %p91, %p92
      %p94 = scmp.ne.s32.totalorder %s80, %s81
      %p95 = scmp.eq.s32.totalorder %s20, 1
      %p96 = por %p94, %p95
      %p98 = scmp.ne.s32.totalorder %s81, %s97
      %p99 = scmp.eq.s32.totalorder %s20, 0
      %p100 = por %p98, %p99
      %s101 = ssub.s32 %s21, %s40
      %s102 = ssub.s32 %s22, %s36
      %s103 = sor.u32 %s101, %s102
      %p104 = scmp.eq.s32.totalorder %s103, 0
      %s106 = sadd.s32 %s105, 1
      %s107 = scalar_select %p104, %s105, %s106
      %p110 = pneg %p104
      %p111 = scmp.eq.s32.totalorder %s14, 1
      %p112 = por %p110, %p111
      %p113 = scmp.ne.s32.totalorder %s105, %s108
      %p114 = scmp.eq.s32.totalorder %s14, 0
      %p115 = por %p113, %p114
      %p116 = scmp.ne.s32.totalorder %s105, %s108
      %p117 = scmp.eq.s32.totalorder %s19, 1
      %p118 = por %p116, %p117
      %p119 = scmp.ne.s32.totalorder %s108, %s109
      %p120 = scmp.eq.s32.totalorder %s19, 0
      %p121 = por %p119, %p120
      %p122 = scmp.ne.s32.totalorder %s108, %s109
      %p123 = scmp.eq.s32.totalorder %s20, 1
      %p124 = por %p122, %p123
      %p126 = scmp.ne.s32.totalorder %s109, %s125
      %p127 = scmp.eq.s32.totalorder %s20, 0
      %p128 = por %p126, %p127
      %p129 = scmp.le.s32.totalorder 1, %s14
      %p130 = scmp.lt.s32.totalorder %s14, 3
      %p131 = pnand %p129, %p130
      %p132 = pneg %p131
      // Predicated region
      $region9: #{custom_seg_loss.1} parent=5 // pred_check
        _
      $region10: #{custom_seg_loss.1} parent=5 // pred_check_branch
        %134 = sbr.rel (%p131) target = $region12
      $region11: #{custom_seg_loss.1} parent=5 // pred_region
        %s135 = ssub.s32 %s14, 1
      $region12: #{custom_seg_loss.1} parent=5 // pred_fallthru
        _
      %p136 = scmp.lt.s32.totalorder %s14, 2
      // Predicated region
      $region13: #{custom_seg_loss.1} parent=5 // pred_check
        %p137 = pneg %p136
      $region14: #{custom_seg_loss.1} parent=5 // pred_check_branch
        %139 = sbr.rel (%p137) target = $region16
      $region15: #{custom_seg_loss.1} parent=5 // pred_region
        // Predicated region
        $region17: #{custom_seg_loss.1} parent=15 // pred_check
          %p140 = pneg %p57
        $region18: #{custom_seg_loss.1} parent=15 // pred_check_branch
          %142 = sbr.rel (%p140) target = $region20
        $region19: #{custom_seg_loss.1} parent=15 // pred_region
          %s143 = sand.u32 %s47, 1
          %s144 = scalar_lea.sflag [#allocation7], %s143
          %s145 = sand.u32 %s47, 1
          %s146 = smul.addr %s145, 64
          %s147 = scalar_lea.vmem [#allocation6], %s146
          %s148 = sadd.s32 %s22, %s23
          %s149 = smul.u32 4, %s148
          %151 = vsyncadd %s144, 0
          %s152 = smul.addr %s21, 16
          %s153 = sadd.s32 %s149, %s152
          %s154 = smul.addr %s153, 4
          %s155 = scalar_lea.hbm %s0, %s154
          %s156 = sshll.u32 %s155, 4
          %s157 = int_to_ptr.hbm [resolvable:$true] %s156
          %s158 = sshll.u32 %s147, 4
          %s159 = int_to_ptr.vmem [resolvable:$true] %s158
          %164 = dma.hbm_to_vmem [thread:$0]  %s157, 1024, %s159, %s144, 64, 64, 4
        $region20: #{custom_seg_loss.1} parent=15 // pred_fallthru
          _
        // Predicated region
        $region21: #{custom_seg_loss.1} parent=15 // pred_check
          %p165 = pneg %p87
        $region22: #{custom_seg_loss.1} parent=15 // pred_check_branch
          %167 = sbr.rel (%p165) target = $region24
        $region23: #{custom_seg_loss.1} parent=15 // pred_region
          %s168 = sand.u32 %s77, 1
          %s169 = scalar_lea.sflag [#allocation9], %s168
          %s170 = sand.u32 %s77, 1
          %s171 = smul.addr %s170, 32
          %s172 = scalar_lea.vmem [#allocation8], %s171
          %s173 = sadd.s32 %s22, %s23
          %s174 = smul.u32 4, %s173
          %176 = vsyncadd %s169, 0
          %s177 = smul.addr %s21, 4
          %s178 = sadd.s32 %s174, %s177
          %s179 = smul.addr %s178, 8
          %s180 = scalar_lea.hbm %s1, %s179
          %s181 = sshll.u32 %s180, 4
          %s182 = int_to_ptr.hbm [resolvable:$true] %s181
          %s183 = sshll.u32 %s172, 4
          %s184 = int_to_ptr.vmem [resolvable:$true] %s183
          %189 = dma.hbm_to_vmem [thread:$0]  %s182, 512, %s184, %s169, 128, 128, 8
        $region24: #{custom_seg_loss.1} parent=15 // pred_fallthru
          _
      $region16: #{custom_seg_loss.1} parent=5 // pred_fallthru
        _
      %p190 = scmp.le.s32.totalorder 1, %s14
      %p191 = scmp.lt.s32.totalorder %s14, 3
      %p192 = pnand %p190, %p191
      %p193 = pneg %p192
      // Predicated region
      $region25: #{custom_seg_loss.1} parent=5 // pred_check
        _
      $region26: #{custom_seg_loss.1} parent=5 // pred_check_branch
        %195 = sbr.rel (%p192) target = $region28
      $region27: #{custom_seg_loss.1} parent=5 // pred_region
        %s196 = ssub.s32 %s14, 1
        %s197 = sand.u32 %s50, 1
        %s198 = scalar_lea.sflag [#allocation7], %s197
        %s199 = sand.u32 %s50, 1
        %s200 = smul.addr %s199, 64
        %s201 = scalar_lea.vmem [#allocation6], %s200
        // Predicated region
        $region29: #{custom_seg_loss.1} parent=27 // pred_check
          %p202 = pneg %p63
        $region30: #{custom_seg_loss.1} parent=27 // pred_check_branch
          %204 = sbr.rel (%p202) target = $region32
        $region31: #{custom_seg_loss.1} parent=27 // pred_region
          %206 = dma.done %s198, 1024
        $region32: #{custom_seg_loss.1} parent=27 // pred_fallthru
          _
        %s207 = sand.u32 %s80, 1
        %s208 = scalar_lea.sflag [#allocation9], %s207
        %s209 = sand.u32 %s80, 1
        %s210 = smul.addr %s209, 32
        %s211 = scalar_lea.vmem [#allocation8], %s210
        // Predicated region
        $region33: #{custom_seg_loss.1} parent=27 // pred_check
          %p212 = pneg %p93
        $region34: #{custom_seg_loss.1} parent=27 // pred_check_branch
          %214 = sbr.rel (%p212) target = $region36
        $region35: #{custom_seg_loss.1} parent=27 // pred_region
          %216 = dma.done %s208, 512
        $region36: #{custom_seg_loss.1} parent=27 // pred_fallthru
          _
        %s217 = sand.u32 %s50, 1
        %s218 = scalar_lea.sflag [#allocation7], %s217
        %s219 = sand.u32 %s50, 1
        %s220 = smul.addr %s219, 64
        %s221 = scalar_lea.vmem [#allocation6], %s220
        %p222 = pneg %p63
        %p223 = pneg %p60
        %s224 = sand.u32 %s80, 1
        %s225 = scalar_lea.sflag [#allocation9], %s224
        %s226 = sand.u32 %s80, 1
        %s227 = smul.addr %s226, 32
        %s228 = scalar_lea.vmem [#allocation8], %s227
        %p229 = pneg %p93
        %p230 = pneg %p90
        %p231 = pneg %p121
        %p232 = pneg %p118
        %p233 = scmp.lt.s32.totalorder %s24, 1
        %s234 = scalar_select %p233, %s24, 1
        %p235 = scmp.lt.s32.totalorder %s25, 0
        %s236 = scalar_select %p235, %s25, 0
        %s237 = sadd.s32 %s236, %s234
        %s238 = smul.addr %s237, 4
        %s239 = scalar_lea.vmem %s2, %s238
        %s240 = sadd.s32 %s25, %s26
        %s241 = smul.u32 4, %s240
        %s242 = sadd.s32 %s25, %s26
        %s243 = smul.u32 4, %s242
        %p244 = scmp.lt.s32.totalorder %s24, 1
        %s245 = scalar_select %p244, %s24, 1
        %p246 = scmp.lt.s32.totalorder %s25, 0
        %s247 = scalar_select %p246, %s25, 0
        %s248 = sadd.s32 %s247, %s245
        %s249 = smul.addr %s248, 4
        %s250 = scalar_lea.vmem %s2, %s249
        %p251 = scmp.eq.s32.totalorder %s26, 0
        // Predicated region
        $region37: #{custom_seg_loss.1} parent=27 // pred_check
          %p252 = pneg %p251
        $region38: #{custom_seg_loss.1} parent=27 // pred_check_branch
          %254 = sbr.rel (%p252) target = $region40
        $region39: #{custom_seg_loss.1} parent=27 // pred_region
          %vm255 = vcmask 257024
          %256 = vst.msk [vmem:[#allocation2] sm:$0xf] %vm255, 0.0
          %257 = vst.msk [vmem:[#allocation3] sm:$0xf] %vm255, 0.0
          %vm258 = vcmask 253952
          %259 = vst.msk [vmem:[#allocation4] sm:$0x1] %vm258, 0.0
          %260 = vst.msk [vmem:[#allocation5] sm:$0xf] %vm255, 0.0
        $region40: #{custom_seg_loss.1} parent=27 // pred_fallthru
          _
        %v261 = vld [vmem:[%s201] sm:$0xf]
        %v262 = vld [vmem:[%s201 + $0x4] sm:$0xf]
        %v263 = vld [vmem:[%s201 + $0x8] sm:$0xf]
        %v264 = vld [vmem:[%s201 + $0xc] sm:$0xf]
        %v265 = vld [vmem:[%s201 + $0x10] sm:$0xf]
        %v266 = vld [vmem:[%s201 + $0x14] sm:$0xf]
        %v267 = vld [vmem:[%s201 + $0x18] sm:$0xf]
        %v268 = vld [vmem:[%s201 + $0x1c] sm:$0xf]
        %v269 = vld [vmem:[%s201 + $0x20] sm:$0xf]
        %v270 = vld [vmem:[%s201 + $0x24] sm:$0xf]
        %v271 = vld [vmem:[%s201 + $0x28] sm:$0xf]
        %v272 = vld [vmem:[%s201 + $0x2c] sm:$0xf]
        %v273 = vld [vmem:[%s201 + $0x30] sm:$0xf]
        %v274 = vld [vmem:[%s201 + $0x34] sm:$0xf]
        %v275 = vld [vmem:[%s201 + $0x38] sm:$0xf]
        %v276 = vld [vmem:[%s201 + $0x3c] sm:$0xf]
        %v277 = vunpack.c.l.bf16 %v261
        %v278 = vunpack.c.l.bf16 %v262
        %v279 = vunpack.c.l.bf16 %v263
        %v280 = vunpack.c.l.bf16 %v264
        %v281 = vunpack.c.l.bf16 %v265
        %v282 = vunpack.c.l.bf16 %v266
        %v283 = vunpack.c.l.bf16 %v267
        %v284 = vunpack.c.l.bf16 %v268
        %v285 = vunpack.c.l.bf16 %v269
        %v286 = vunpack.c.l.bf16 %v270
        %v287 = vunpack.c.l.bf16 %v271
        %v288 = vunpack.c.l.bf16 %v272
        %v289 = vunpack.c.l.bf16 %v273
        %v290 = vunpack.c.l.bf16 %v274
        %v291 = vunpack.c.l.bf16 %v275
        %v292 = vunpack.c.l.bf16 %v276
        %v293 = vld [vmem:[%s211] sm:$0xff]
        %v294 = vld [vmem:[%s211 + $0x8] sm:$0xff]
        %v295 = vld [vmem:[%s211 + $0x10] sm:$0xff]
        %v296 = vld [vmem:[%s211 + $0x18] sm:$0xff]
        %v297 = vmax.f32 %v277, 0.0
        %v298 = vmax.f32 %v278, 0.0
        %v299 = vmax.f32 %v279, 0.0
        %v300 = vmax.f32 %v280, 0.0
        %v301 = vmax.f32 %v281, 0.0
        %v302 = vmax.f32 %v282, 0.0
        %v303 = vmax.f32 %v283, 0.0
        %v304 = vmax.f32 %v284, 0.0
        %v305 = vmax.f32 %v285, 0.0
        %v306 = vmax.f32 %v286, 0.0
        %v307 = vmax.f32 %v287, 0.0
        %v308 = vmax.f32 %v288, 0.0
        %v309 = vmax.f32 %v289, 0.0
        %v310 = vmax.f32 %v290, 0.0
        %v311 = vmax.f32 %v291, 0.0
        %v312 = vmax.f32 %v292, 0.0
        %v313 = vand.u32 2147483647, %v277
        %v314 = vand.u32 2147483647, %v278
        %v315 = vand.u32 2147483647, %v279
        %v316 = vand.u32 2147483647, %v280
        %v317 = vand.u32 2147483647, %v281
        %v318 = vand.u32 2147483647, %v282
        %v319 = vand.u32 2147483647, %v283
        %v320 = vand.u32 2147483647, %v284
        %v321 = vand.u32 2147483647, %v285
        %v322 = vand.u32 2147483647, %v286
        %v323 = vand.u32 2147483647, %v287
        %v324 = vand.u32 2147483647, %v288
        %v325 = vand.u32 2147483647, %v289
        %v326 = vand.u32 2147483647, %v290
        %v327 = vand.u32 2147483647, %v291
        %v328 = vand.u32 2147483647, %v292
        %v329 = vsub.f32 0.0, %v313
        %v330 = vsub.f32 0.0, %v314
        %v331 = vsub.f32 0.0, %v315
        %v332 = vsub.f32 0.0, %v316
        %v333 = vsub.f32 0.0, %v317
        %v334 = vsub.f32 0.0, %v318
        %v335 = vsub.f32 0.0, %v319
        %v336 = vsub.f32 0.0, %v320
        %v337 = vsub.f32 0.0, %v321
        %v338 = vsub.f32 0.0, %v322
        %v339 = vsub.f32 0.0, %v323
        %v340 = vsub.f32 0.0, %v324
        %v341 = vsub.f32 0.0, %v325
        %v342 = vsub.f32 0.0, %v326
        %v343 = vsub.f32 0.0, %v327
        %v344 = vsub.f32 0.0, %v328
        %v345 = vmul.f32 %v329, 1.442695
        %v346 = vpow.pop %v345
        %v347 = vmul.f32 %v330, 1.442695
        %v348 = vpow.pop %v347
        %v349 = vmul.f32 %v331, 1.442695
        %v350 = vpow.pop %v349
        %v351 = vmul.f32 %v332, 1.442695
        %v352 = vpow.pop %v351
        %v353 = vmul.f32 %v333, 1.442695
        %v354 = vpow.pop %v353
        %v355 = vmul.f32 %v334, 1.442695
        %v356 = vpow.pop %v355
        %v357 = vmul.f32 %v335, 1.442695
        %v358 = vpow.pop %v357
        %v359 = vmul.f32 %v336, 1.442695
        %v360 = vpow.pop %v359
        %v361 = vmul.f32 %v337, 1.442695
        %v362 = vpow.pop %v361
        %v363 = vmul.f32 %v338, 1.442695
        %v364 = vpow.pop %v363
        %v365 = vmul.f32 %v339, 1.442695
        %v366 = vpow.pop %v365
        %v367 = vmul.f32 %v340, 1.442695
        %v368 = vpow.pop %v367
        %v369 = vmul.f32 %v341, 1.442695
        %v370 = vpow.pop %v369
        %v371 = vmul.f32 %v342, 1.442695
        %v372 = vpow.pop %v371
        %v373 = vmul.f32 %v343, 1.442695
        %v374 = vpow.pop %v373
        %v375 = vmul.f32 %v344, 1.442695
        %v376 = vpow.pop %v375
        %v377 = vadd.f32 %v346, 1.0
        %v378 = vadd.f32 %v348, 1.0
        %v379 = vadd.f32 %v350, 1.0
        %v380 = vadd.f32 %v352, 1.0
        %v381 = vadd.f32 %v354, 1.0
        %v382 = vadd.f32 %v356, 1.0
        %v383 = vadd.f32 %v358, 1.0
        %v384 = vadd.f32 %v360, 1.0
        %v385 = vadd.f32 %v362, 1.0
        %v386 = vadd.f32 %v364, 1.0
        %v387 = vadd.f32 %v366, 1.0
        %v388 = vadd.f32 %v368, 1.0
        %v389 = vadd.f32 %v370, 1.0
        %v390 = vadd.f32 %v372, 1.0
        %v391 = vadd.f32 %v374, 1.0
        %v392 = vadd.f32 %v376, 1.0
        %v393 = vlog2.pop %v377
        %v394 = vmul.f32 %v393, 0.6931472
        %v395 = vlog2.pop %v378
        %v396 = vmul.f32 %v395, 0.6931472
        %v397 = vlog2.pop %v379
        %v398 = vmul.f32 %v397, 0.6931472
        %v399 = vlog2.pop %v380
        %v400 = vmul.f32 %v399, 0.6931472
        %v401 = vlog2.pop %v381
        %v402 = vmul.f32 %v401, 0.6931472
        %v403 = vlog2.pop %v382
        %v404 = vmul.f32 %v403, 0.6931472
        %v405 = vlog2.pop %v383
        %v406 = vmul.f32 %v405, 0.6931472
        %v407 = vlog2.pop %v384
        %v408 = vmul.f32 %v407, 0.6931472
        %v409 = vlog2.pop %v385
        %v410 = vmul.f32 %v409, 0.6931472
        %v411 = vlog2.pop %v386
        %v412 = vmul.f32 %v411, 0.6931472
        %v413 = vlog2.pop %v387
        %v414 = vmul.f32 %v413, 0.6931472
        %v415 = vlog2.pop %v388
        %v416 = vmul.f32 %v415, 0.6931472
        %v417 = vlog2.pop %v389
        %v418 = vmul.f32 %v417, 0.6931472
        %v419 = vlog2.pop %v390
        %v420 = vmul.f32 %v419, 0.6931472
        %v421 = vlog2.pop %v391
        %v422 = vmul.f32 %v421, 0.6931472
        %v423 = vlog2.pop %v392
        %v424 = vmul.f32 %v423, 0.6931472
        %v425 = vadd.f32 %v297, %v394
        %v426 = vadd.f32 %v298, %v396
        %v427 = vadd.f32 %v299, %v398
        %v428 = vadd.f32 %v300, %v400
        %v429 = vadd.f32 %v301, %v402
        %v430 = vadd.f32 %v302, %v404
        %v431 = vadd.f32 %v303, %v406
        %v432 = vadd.f32 %v304, %v408
        %v433 = vadd.f32 %v305, %v410
        %v434 = vadd.f32 %v306, %v412
        %v435 = vadd.f32 %v307, %v414
        %v436 = vadd.f32 %v308, %v416
        %v437 = vadd.f32 %v309, %v418
        %v438 = vadd.f32 %v310, %v420
        %v439 = vadd.f32 %v311, %v422
        %v440 = vadd.f32 %v312, %v424
        %v441 = vmul.f32 %v293, %v277
        %v442 = vmul.f32 %v294, %v278
        %v443 = vmul.f32 %v295, %v279
        %v444 = vmul.f32 %v296, %v280
        %v445 = vmul.f32 %v293, %v281
        %v446 = vmul.f32 %v294, %v282
        %v447 = vmul.f32 %v295, %v283
        %v448 = vmul.f32 %v296, %v284
        %v449 = vmul.f32 %v293, %v285
        %v450 = vmul.f32 %v294, %v286
        %v451 = vmul.f32 %v295, %v287
        %v452 = vmul.f32 %v296, %v288
        %v453 = vmul.f32 %v293, %v289
        %v454 = vmul.f32 %v294, %v290
        %v455 = vmul.f32 %v295, %v291
        %v456 = vmul.f32 %v296, %v292
        %v457 = vsub.f32 %v425, %v441
        %v458 = vsub.f32 %v426, %v442
        %v459 = vsub.f32 %v427, %v443
        %v460 = vsub.f32 %v428, %v444
        %v461 = vsub.f32 %v429, %v445
        %v462 = vsub.f32 %v430, %v446
        %v463 = vsub.f32 %v431, %v447
        %v464 = vsub.f32 %v432, %v448
        %v465 = vsub.f32 %v433, %v449
        %v466 = vsub.f32 %v434, %v450
        %v467 = vsub.f32 %v435, %v451
        %v468 = vsub.f32 %v436, %v452
        %v469 = vsub.f32 %v437, %v453
        %v470 = vsub.f32 %v438, %v454
        %v471 = vsub.f32 %v439, %v455
        %v472 = vsub.f32 %v440, %v456
        %vm473 = vcmp.gt.f32.partialorder %v277, 0.0
        %vm474 = vcmp.gt.f32.partialorder %v278, 0.0
        %vm475 = vcmp.gt.f32.partialorder %v279, 0.0
        %vm476 = vcmp.gt.f32.partialorder %v280, 0.0
        %vm477 = vcmp.gt.f32.partialorder %v281, 0.0
        %vm478 = vcmp.gt.f32.partialorder %v282, 0.0
        %vm479 = vcmp.gt.f32.partialorder %v283, 0.0
        %vm480 = vcmp.gt.f32.partialorder %v284, 0.0
        %vm481 = vcmp.gt.f32.partialorder %v285, 0.0
        %vm482 = vcmp.gt.f32.partialorder %v286, 0.0
        %vm483 = vcmp.gt.f32.partialorder %v287, 0.0
        %vm484 = vcmp.gt.f32.partialorder %v288, 0.0
        %vm485 = vcmp.gt.f32.partialorder %v289, 0.0
        %vm486 = vcmp.gt.f32.partialorder %v290, 0.0
        %vm487 = vcmp.gt.f32.partialorder %v291, 0.0
        %vm488 = vcmp.gt.f32.partialorder %v292, 0.0
        %v489 = vsel %vm473, %v293, 0.0
        %v490 = vsel %vm474, %v294, 0.0
        %v491 = vsel %vm475, %v295, 0.0
        %v492 = vsel %vm476, %v296, 0.0
        %v493 = vsel %vm477, %v293, 0.0
        %v494 = vsel %vm478, %v294, 0.0
        %v495 = vsel %vm479, %v295, 0.0
        %v496 = vsel %vm480, %v296, 0.0
        %v497 = vsel %vm481, %v293, 0.0
        %v498 = vsel %vm482, %v294, 0.0
        %v499 = vsel %vm483, %v295, 0.0
        %v500 = vsel %vm484, %v296, 0.0
        %v501 = vsel %vm485, %v293, 0.0
        %v502 = vsel %vm486, %v294, 0.0
        %v503 = vsel %vm487, %v295, 0.0
        %v504 = vsel %vm488, %v296, 0.0
        %v505 = vsel %vm473, 1.0, 0.0
        %v506 = vsel %vm474, 1.0, 0.0
        %v507 = vsel %vm475, 1.0, 0.0
        %v508 = vsel %vm476, 1.0, 0.0
        %v509 = vsel %vm477, 1.0, 0.0
        %v510 = vsel %vm478, 1.0, 0.0
        %v511 = vsel %vm479, 1.0, 0.0
        %v512 = vsel %vm480, 1.0, 0.0
        %v513 = vsel %vm481, 1.0, 0.0
        %v514 = vsel %vm482, 1.0, 0.0
        %v515 = vsel %vm483, 1.0, 0.0
        %v516 = vsel %vm484, 1.0, 0.0
        %v517 = vsel %vm485, 1.0, 0.0
        %v518 = vsel %vm486, 1.0, 0.0
        %v519 = vsel %vm487, 1.0, 0.0
        %v520 = vsel %vm488, 1.0, 0.0
        %v521 = vld [vmem:[#allocation2] sm:$0xf]
        %vm522 = vcmask 261120
        %v523 = vsel %vm522, %v457, 0.0
        %v524 = vsel %vm522, %v458, 0.0
        %v525 = vadd.f32 %v523, %v524
        %v526 = vsel %vm522, %v459, 0.0
        %v527 = vadd.f32 %v525, %v526
        %v528 = vsel %vm522, %v460, 0.0
        %v529 = vadd.f32 %v527, %v528
        %v530 = vrot.slane %v529, 4
        %v531 = vadd.f32 %v529, %v530
        %v532 = vrot.slane %v531, 2
        %v533 = vadd.f32 %v531, %v532
        %v534 = vrot.slane %v533, 1
        %v535 = vadd.f32 %v533, %v534
        %v536 = vsel %vm522, %v461, 0.0
        %v537 = vsel %vm522, %v462, 0.0
        %v538 = vadd.f32 %v536, %v537
        %v539 = vsel %vm522, %v463, 0.0
        %v540 = vadd.f32 %v538, %v539
        %v541 = vsel %vm522, %v464, 0.0
        %v542 = vadd.f32 %v540, %v541
        %v543 = vrot.slane %v542, 4
        %v544 = vadd.f32 %v542, %v543
        %v545 = vrot.slane %v544, 2
        %v546 = vadd.f32 %v544, %v545
        %v547 = vrot.slane %v546, 1
        %v548 = vadd.f32 %v546, %v547
        %v549 = vsel %vm522, %v465, 0.0
        %v550 = vsel %vm522, %v466, 0.0
        %v551 = vadd.f32 %v549, %v550
        %v552 = vsel %vm522, %v467, 0.0
        %v553 = vadd.f32 %v551, %v552
        %v554 = vsel %vm522, %v468, 0.0
        %v555 = vadd.f32 %v553, %v554
        %v556 = vrot.slane %v555, 4
        %v557 = vadd.f32 %v555, %v556
        %v558 = vrot.slane %v557, 2
        %v559 = vadd.f32 %v557, %v558
        %v560 = vrot.slane %v559, 1
        %v561 = vadd.f32 %v559, %v560
        %v562 = vsel %vm522, %v469, 0.0
        %v563 = vsel %vm522, %v470, 0.0
        %v564 = vadd.f32 %v562, %v563
        %v565 = vsel %vm522, %v471, 0.0
        %v566 = vadd.f32 %v564, %v565
        %v567 = vsel %vm522, %v472, 0.0
        %v568 = vadd.f32 %v566, %v567
        %v569 = vrot.slane %v568, 4
        %v570 = vadd.f32 %v568, %v569
        %v571 = vrot.slane %v570, 2
        %v572 = vadd.f32 %v570, %v571
        %v573 = vrot.slane %v572, 1
        %v574 = vadd.f32 %v572, %v573
        %vm579 = vcmask 1041409
        %v580 = vsel %vm579, %v548, %v535
        %vm581 = vcmask 1042434
        %v582 = vsel %vm581, %v561, %v580
        %vm583 = vcmask 1043459
        %v584 = vsel %vm583, %v574, %v582
        %v586 = vadd.f32 %v521, %v584
        %vm587 = vcmask 257024
        %588 = vst.msk [vmem:[#allocation2] sm:$0xf] %vm587, %v586
        %v589 = vld [vmem:[#allocation3] sm:$0xf]
        %v590 = vsel %vm522, %v489, 0.0
        %v591 = vsel %vm522, %v490, 0.0
        %v592 = vadd.f32 %v590, %v591
        %v593 = vsel %vm522, %v491, 0.0
        %v594 = vadd.f32 %v592, %v593
        %v595 = vsel %vm522, %v492, 0.0
        %v596 = vadd.f32 %v594, %v595
        %v597 = vrot.slane %v596, 4
        %v598 = vadd.f32 %v596, %v597
        %v599 = vrot.slane %v598, 2
        %v600 = vadd.f32 %v598, %v599
        %v601 = vrot.slane %v600, 1
        %v602 = vadd.f32 %v600, %v601
        %v603 = vsel %vm522, %v493, 0.0
        %v604 = vsel %vm522, %v494, 0.0
        %v605 = vadd.f32 %v603, %v604
        %v606 = vsel %vm522, %v495, 0.0
        %v607 = vadd.f32 %v605, %v606
        %v608 = vsel %vm522, %v496, 0.0
        %v609 = vadd.f32 %v607, %v608
        %v610 = vrot.slane %v609, 4
        %v611 = vadd.f32 %v609, %v610
        %v612 = vrot.slane %v611, 2
        %v613 = vadd.f32 %v611, %v612
        %v614 = vrot.slane %v613, 1
        %v615 = vadd.f32 %v613, %v614
        %v616 = vsel %vm522, %v497, 0.0
        %v617 = vsel %vm522, %v498, 0.0
        %v618 = vadd.f32 %v616, %v617
        %v619 = vsel %vm522, %v499, 0.0
        %v620 = vadd.f32 %v618, %v619
        %v621 = vsel %vm522, %v500, 0.0
        %v622 = vadd.f32 %v620, %v621
        %v623 = vrot.slane %v622, 4
        %v624 = vadd.f32 %v622, %v623
        %v625 = vrot.slane %v624, 2
        %v626 = vadd.f32 %v624, %v625
        %v627 = vrot.slane %v626, 1
        %v628 = vadd.f32 %v626, %v627
        %v629 = vsel %vm522, %v501, 0.0
        %v630 = vsel %vm522, %v502, 0.0
        %v631 = vadd.f32 %v629, %v630
        %v632 = vsel %vm522, %v503, 0.0
        %v633 = vadd.f32 %v631, %v632
        %v634 = vsel %vm522, %v504, 0.0
        %v635 = vadd.f32 %v633, %v634
        %v636 = vrot.slane %v635, 4
        %v637 = vadd.f32 %v635, %v636
        %v638 = vrot.slane %v637, 2
        %v639 = vadd.f32 %v637, %v638
        %v640 = vrot.slane %v639, 1
        %v641 = vadd.f32 %v639, %v640
        %v646 = vsel %vm579, %v615, %v602
        %v647 = vsel %vm581, %v628, %v646
        %v648 = vsel %vm583, %v641, %v647
        %v650 = vadd.f32 %v589, %v648
        %651 = vst.msk [vmem:[#allocation3] sm:$0xf] %vm587, %v650
        %v652 = vld [vmem:[#allocation5] sm:$0xf]
        %v653 = vsel %vm522, %v505, 0.0
        %v654 = vsel %vm522, %v506, 0.0
        %v655 = vadd.f32 %v653, %v654
        %v656 = vsel %vm522, %v507, 0.0
        %v657 = vadd.f32 %v655, %v656
        %v658 = vsel %vm522, %v508, 0.0
        %v659 = vadd.f32 %v657, %v658
        %v660 = vrot.slane %v659, 4
        %v661 = vadd.f32 %v659, %v660
        %v662 = vrot.slane %v661, 2
        %v663 = vadd.f32 %v661, %v662
        %v664 = vrot.slane %v663, 1
        %v665 = vadd.f32 %v663, %v664
        %v666 = vsel %vm522, %v509, 0.0
        %v667 = vsel %vm522, %v510, 0.0
        %v668 = vadd.f32 %v666, %v667
        %v669 = vsel %vm522, %v511, 0.0
        %v670 = vadd.f32 %v668, %v669
        %v671 = vsel %vm522, %v512, 0.0
        %v672 = vadd.f32 %v670, %v671
        %v673 = vrot.slane %v672, 4
        %v674 = vadd.f32 %v672, %v673
        %v675 = vrot.slane %v674, 2
        %v676 = vadd.f32 %v674, %v675
        %v677 = vrot.slane %v676, 1
        %v678 = vadd.f32 %v676, %v677
        %v679 = vsel %vm522, %v513, 0.0
        %v680 = vsel %vm522, %v514, 0.0
        %v681 = vadd.f32 %v679, %v680
        %v682 = vsel %vm522, %v515, 0.0
        %v683 = vadd.f32 %v681, %v682
        %v684 = vsel %vm522, %v516, 0.0
        %v685 = vadd.f32 %v683, %v684
        %v686 = vrot.slane %v685, 4
        %v687 = vadd.f32 %v685, %v686
        %v688 = vrot.slane %v687, 2
        %v689 = vadd.f32 %v687, %v688
        %v690 = vrot.slane %v689, 1
        %v691 = vadd.f32 %v689, %v690
        %v692 = vsel %vm522, %v517, 0.0
        %v693 = vsel %vm522, %v518, 0.0
        %v694 = vadd.f32 %v692, %v693
        %v695 = vsel %vm522, %v519, 0.0
        %v696 = vadd.f32 %v694, %v695
        %v697 = vsel %vm522, %v520, 0.0
        %v698 = vadd.f32 %v696, %v697
        %v699 = vrot.slane %v698, 4
        %v700 = vadd.f32 %v698, %v699
        %v701 = vrot.slane %v700, 2
        %v702 = vadd.f32 %v700, %v701
        %v703 = vrot.slane %v702, 1
        %v704 = vadd.f32 %v702, %v703
        %v709 = vsel %vm579, %v678, %v665
        %v710 = vsel %vm581, %v691, %v709
        %v711 = vsel %vm583, %v704, %v710
        %v713 = vadd.f32 %v652, %v711
        %714 = vst.msk [vmem:[#allocation5] sm:$0xf] %vm587, %v713
        %v715 = vld [vmem:[#allocation4] sm:$0x1]
        %v716 = vsel %vm522, %v293, 0.0
        %v717 = vsel %vm522, %v294, 0.0
        %v718 = vadd.f32 %v716, %v717
        %v719 = vsel %vm522, %v295, 0.0
        %v720 = vadd.f32 %v718, %v719
        %v721 = vsel %vm522, %v296, 0.0
        %v722 = vadd.f32 %v720, %v721
        %v723 = vrot.slane %v722, 4
        %v724 = vadd.f32 %v722, %v723
        %v725 = vrot.slane %v724, 2
        %v726 = vadd.f32 %v724, %v725
        %v727 = vrot.slane %v726, 1
        %v728 = vadd.f32 %v726, %v727
        %v729 = vadd.f32 %v715, %v728
        %vm730 = vcmask 253952
        %731 = vst.msk [vmem:[#allocation4] sm:$0x1] %vm730, %v729
        // Predicated region
        $region41: #{custom_seg_loss.1} parent=27 // pred_check
          %p732 = pneg %p251
        $region42: #{custom_seg_loss.1} parent=27 // pred_check_branch
          %734 = sbr.rel (%p732) target = $region44
        $region43: #{custom_seg_loss.1} parent=27 // pred_region
          %v735 = vld [vmem:[#allocation2] sm:$0xf]
          %v736 = vsel %vm587, %v735, 0.0
          %737 = vadd.xlane.f32.xlu0 %v736
          %v738 = vpop.xlane.xlu0 %737
          %v739 = vld [vmem:[#allocation3] sm:$0xf]
          %v740 = vsel %vm587, %v739, 0.0
          %741 = vadd.xlane.f32.xlu0 %v740
          %v742 = vpop.xlane.xlu0 %741
          %v743 = vld [vmem:[#allocation5] sm:$0xf]
          %v744 = vsel %vm587, %v743, 0.0
          %745 = vadd.xlane.f32.xlu0 %v744
          %v746 = vpop.xlane.xlu0 %745
          %v747 = vld [vmem:[#allocation4] sm:$0x1]
          %v748 = vsel %vm730, %v747, 0.0
          %749 = vadd.xlane.f32.xlu0 %v748
          %v750 = vpop.xlane.xlu0 %749
          %v752 = vlaneseq
          %v753 = vand.u32 %v752, 127
          %v754 = vperm.slane %v738, %v753
          %v757 = vperm.slane %v742, %v753
          %v760 = vrot.slane %v750, 6
          %v763 = vperm.slane %v746, %v753
          %vm765 = vcmask 1040384
          %v766 = vsel %vm765, %v754, %v757
          %vm767 = vcmask 1041408
          %v768 = vsel %vm767, %v766, %v760
          %vm769 = vcmask 1042432
          %v770 = vsel %vm769, %v768, %v763
          %vm771 = vcmask 27648
          %772 = vst.msk [vmem:[%s250] sm:$0xf] %vm771, %v770
        $region44: #{custom_seg_loss.1} parent=27 // pred_fallthru
          _
        %p773 = scmp.lt.s32.totalorder %s24, 1
        %s774 = scalar_select %p773, %s24, 1
        %p775 = scmp.lt.s32.totalorder %s25, 0
        %s776 = scalar_select %p775, %s25, 0
        %s777 = sadd.s32 %s776, %s774
        %s778 = smul.addr %s777, 4
        %s779 = scalar_lea.vmem %s2, %s778
        // Predicated region
        $region45: #{custom_seg_loss.1} parent=27 // pred_check
          %p780 = pneg %p118
        $region46: #{custom_seg_loss.1} parent=27 // pred_check_branch
          %782 = sbr.rel (%p780) target = $region48
        $region47: #{custom_seg_loss.1} parent=27 // pred_region
          _
        $region48: #{custom_seg_loss.1} parent=27 // pred_fallthru
          _
      $region28: #{custom_seg_loss.1} parent=5 // pred_fallthru
        _
      %p783 = scmp.le.s32.totalorder 2, %s14
      // Predicated region
      $region49: #{custom_seg_loss.1} parent=5 // pred_check
        %p784 = pneg %p783
      $region50: #{custom_seg_loss.1} parent=5 // pred_check_branch
        %786 = sbr.rel (%p784) target = $region52
      $region51: #{custom_seg_loss.1} parent=5 // pred_region
        %s787 = ssub.s32 %s14, 2
        // Predicated region
        $region53: #{custom_seg_loss.1} parent=51 // pred_check
          %p788 = pneg %p124
        $region54: #{custom_seg_loss.1} parent=51 // pred_check_branch
          %790 = sbr.rel (%p788) target = $region56
        $region55: #{custom_seg_loss.1} parent=51 // pred_region
          %p791 = scmp.lt.s32.totalorder %s27, 1
          %s792 = scalar_select %p791, %s27, 1
          %p793 = scmp.lt.s32.totalorder %s28, 0
          %s794 = scalar_select %p793, %s28, 0
          %s795 = sadd.s32 %s794, %s792
          %s796 = smul.addr %s795, 4
          %s797 = scalar_lea.vmem %s2, %s796
        $region56: #{custom_seg_loss.1} parent=51 // pred_fallthru
          _
      $region52: #{custom_seg_loss.1} parent=5 // pred_fallthru
        _
    $region6: #{custom_seg_loss.1} parent=1 // loop_footer
      %s18 = sadd.s32 1, %s14
    $region7: #{custom_seg_loss.1} parent=1 // loop_footer_branch
      %13 = sbr.rel target = $region3
    $region8: #{custom_seg_loss.1} parent=1 // loop_exit
      _
    %798 = vsyncpa [#allocation7], 1
    %s799 = scalar_lea.sflag [#allocation7], 1
    %800 = vsyncpa %s799, 1
    %801 = vsyncpa [#allocation9], 1
    %s802 = scalar_lea.sflag [#allocation9], 1
    %803 = vsyncpa %s802, 1

</llo_original>
